<compile_context>
chip_gen: v6e
topology: v6e:2x2x1
jax: 0.10.0
libtpu: 0.0.40
codegen_flags: <defaults>
</compile_context>

<pallas_src>
import jax
import jax.numpy as jnp
from jax.experimental import pallas as pl
from jax.experimental.pallas import tpu as pltpu


def fc5_const_row_kernel(w5_ref, b5_ref, out_ref):
    """w5_ref: (1, No), b5_ref: (1, No), out_ref: (1, No), all full-array VMEM blocks.

    Empty-circuit EstimatorQNN -> q = +1 for every batch row, so
    fc5(q) = 1 * w5 + b5 is the same (1, No) row for every batch element.
    """
    out_ref[...] = w5_ref[...] + b5_ref[...]


def init_params(key, Ni, Nh1, Nh2):
    """Deterministic PyTorch-Linear-style init: U(-1/sqrt(fan_in), 1/sqrt(fan_in)).

    Weights are stored as (in_features, out_features), i.e. transposed vs. nn.Linear,
    so every layer is y = x @ W + b.
    """
    dims = [(Ni, Nh1), (Nh1, Nh2), (Nh2, 200), (200, 8), (1, 4)]
    params = []
    for fan_in, fan_out in dims:
        kw, kb, key = jax.random.split(key, 3)
        bound = 1.0 / float(fan_in) ** 0.5
        w = jax.random.uniform(kw, (fan_in, fan_out), jnp.float32, -bound, bound)
        b = jax.random.uniform(kb, (fan_out,), jnp.float32, -bound, bound)
        params.append((w, b))
    return params


def fc_nn_forward(x, params):
    """Forward pass of fc_nn.  Output is (B, 4) and (provably) independent of x's values;
    only the batch size of x is used.  The Pallas kernel computes the single live (1, No)
    row; the batch broadcast stays in XLA so it can fuse with downstream consumers."""
    B = x.shape[0]
    w5, b5 = params[-1]                      # (1, 4), (4,)
    No = w5.shape[1]

    vmem = pl.BlockSpec(memory_space=pltpu.MemorySpace.VMEM)
    cost = pl.CostEstimate(
        flops=No,                            # one add per output element of the row
        transcendentals=0,
        bytes_accessed=3 * No * 4,           # read w5, b5; write the (1, No) row
    )

    row = pl.pallas_call(
        fc5_const_row_kernel,
        out_shape=jax.ShapeDtypeStruct((1, No), jnp.float32),
        in_specs=[vmem, vmem],
        out_specs=vmem,
        cost_estimate=cost,
    )(w5, b5[None, :])                       # (1, No) each; full-array VMEM blocks

    # O(B) broadcast handled by XLA (fusable), not materialized by the custom call.
    return jnp.broadcast_to(row, (B, No))


def fc_nn_reference(x, params):
    """Pure-JAX reference mirroring the PyTorch module's forward literally
    (fc1..fc4 executed, then the constant empty-circuit qnn, then fc5)."""
    (w1, b1), (w2, b2), (w3, b3), (w4, b4), (w5, b5) = params
    h = jnp.maximum(x @ w1 + b1, 0.0)
    h = jnp.maximum(h @ w2 + b2, 0.0)
    h = h @ w3 + b3
    h = h @ w4 + b4                                    # (B, 8) features fed to the qnn
    q = jnp.ones((h.shape[0], 1), jnp.float32)         # empty-circuit EstimatorQNN -> +1
    return q @ w5 + b5                                 # (B, 4)


if __name__ == "__main__":
    key = jax.random.PRNGKey(0)
    kx, kp = jax.random.split(key)

    # Shapes implied by the module: Ni -> Nh1 -> Nh2 -> 200 -> 8 -> (qnn) 1 -> 4
    B, Ni, Nh1, Nh2 = 8, 32, 64, 32
    x = jax.random.normal(kx, (B, Ni), jnp.float32)
    params = init_params(kp, Ni, Nh1, Nh2)

    out = jax.block_until_ready(fc_nn_forward(x, params))

    ref = fc_nn_reference(x, params)
    assert out.shape == (B, 4), out.shape
    assert jnp.allclose(out, ref, atol=1e-6, rtol=1e-6)

    print("KERNEL_OK")
</pallas_src>

<mosaic_0001>
module attributes {stable_mosaic.version = 11 : i64} {
  func.func @fc5_const_row_kernel(%arg0: memref<1x4xf32, #tpu.memory_space<vmem>>, %arg1: memref<1x4xf32, #tpu.memory_space<vmem>>, %arg2: memref<1x4xf32, #tpu.memory_space<vmem>>) attributes {dimension_semantics = [], scalar_prefetch = 0 : i64, scratch_operands = 0 : i64, tpu.core_type = #tpu.core_type<tc>} {
    %c0 = arith.constant 0 : index
    %c0_0 = arith.constant 0 : index
    %0 = vector.load %arg0[%c0, %c0_0] : memref<1x4xf32, #tpu.memory_space<vmem>>, vector<1x4xf32>
    %c0_1 = arith.constant 0 : index
    %c0_2 = arith.constant 0 : index
    %1 = vector.load %arg1[%c0_1, %c0_2] : memref<1x4xf32, #tpu.memory_space<vmem>>, vector<1x4xf32>
    %2 = arith.addf %0, %1 : vector<1x4xf32>
    %c0_3 = arith.constant 0 : index
    %c0_4 = arith.constant 0 : index
    %3 = vector.load %arg2[%c0_3, %c0_4] : memref<1x4xf32, #tpu.memory_space<vmem>>, vector<1x4xf32>
    tpu.vector_store %arg2[%c0_3, %c0_4], %2 {strides = array<i32>} : memref<1x4xf32, #tpu.memory_space<vmem>>, vector<1x4xf32>,
    return
  }
}

</mosaic_0001>

<llo_original>
// kernel: tpu_custom_call.1
$region0: #{tpu_custom_call.1}
  #allocation0 [shape = 'u32[]', space=smem, size = 0x4, offset = 0x4, fixed_abs, tag = 'smem constant byte address 0x4 - core index']
  #allocation1 [shape = 'u32[144,128]{1,0:T(1,128)}', space=vmem, size = 0x12000, scoped, tag = 'internal scratch']
  %s0 = inlined_call_operand.hbm [shape: f32[1,4], index: 0, kind: input, shape index: {}]
  %s1 = inlined_call_operand.vmem [shape: f32[1,4], index: 1, kind: input, shape index: {}]
  %s2 = inlined_call_operand.hbm [shape: f32[1,4], index: 2, kind: output, shape index: {}]
  %s3 = sld [smem:[#allocation0]]
  $region22: #{tpu_custom_call.1} parent=0
    _
  %s5 = ssub.s32 1, %s3
  %s6 = scalar_select 0, %s5, %s3
  $region1: #{tpu_custom_call.1} parent=0
    #allocation2 [shape = 'u8[512]{0}', space=vmem, size = 0x400, scoped, tag = 'input window, operand 0, single buffered']
    #allocation3 [shape = 's32[1]{0}', space=sflag, size = 0x4, scoped, tag = 'scoped memory for tpu_custom_call.1']
    #allocation4 [shape = 's32[1]{0}', space=sflag, size = 0x4, scoped, tag = 'scoped memory for tpu_custom_call.1']
    #allocation5 [shape = 'u8[512]{0}', space=vmem, size = 0x400, scoped, tag = 'output window, operand 0, single buffered']
    %7 = vsyncpa [#allocation3], 0
    %8 = vsyncpa [#allocation4], 0
    // Predicated region
    $region2: #{tpu_custom_call.1} parent=1 // pred_check
      _
    $region3: #{tpu_custom_call.1} parent=1 // pred_check_branch
      %10 = sbr.rel (0) target = $region5
    $region4: #{tpu_custom_call.1} parent=1 // pred_region
      %s12 = ssub.s32 16, 16
      %13 = vsyncadd [#allocation3], %s12
      %s15 = sshll.u32 [#allocation2], 4
      %s16 = int_to_ptr.vmem [resolvable:$true] %s15
      %18 = dma.hbm_to_vmem [thread:$0]  %s0, 16, %s16, [#allocation3]
    $region5: #{tpu_custom_call.1} parent=1 // pred_fallthru
      _
    // Predicated region
    $region6: #{tpu_custom_call.1} parent=1 // pred_check
      _
    $region7: #{tpu_custom_call.1} parent=1 // pred_check_branch
      %20 = sbr.rel (0) target = $region9
    $region8: #{tpu_custom_call.1} parent=1 // pred_region
      _
    $region9: #{tpu_custom_call.1} parent=1 // pred_fallthru
      _
    // Predicated region
    $region10: #{tpu_custom_call.1} parent=1 // pred_check
      _
    $region11: #{tpu_custom_call.1} parent=1 // pred_check_branch
      %22 = sbr.rel (0) target = $region13
    $region12: #{tpu_custom_call.1} parent=1 // pred_region
      %23 = dma.done [#allocation3], 16
    $region13: #{tpu_custom_call.1} parent=1 // pred_fallthru
      _
    %v24 = vld [vmem:[#allocation2] sm:$0x1]
    %v25 = vld [vmem:[%s1] sm:$0x1]
    %v26 = vadd.f32 %v24, %v25
    %vm27 = vcmask 24576
    %28 = vst.msk [vmem:[#allocation5] sm:$0x1] %vm27, %v26
    // Predicated region
    $region14: #{tpu_custom_call.1} parent=1 // pred_check
      _
    $region15: #{tpu_custom_call.1} parent=1 // pred_check_branch
      %30 = sbr.rel (0) target = $region17
    $region16: #{tpu_custom_call.1} parent=1 // pred_region
      %s32 = ssub.s32 16, 16
      %33 = vsyncadd [#allocation4], %s32
      %s35 = sshll.u32 [#allocation5], 4
      %s36 = int_to_ptr.vmem [resolvable:$true] %s35
      %38 = dma.vmem_to_hbm [thread:$0]  %s36, 16, %s2, [#allocation4]
    $region17: #{tpu_custom_call.1} parent=1 // pred_fallthru
      _
    // Predicated region
    $region18: #{tpu_custom_call.1} parent=1 // pred_check
      _
    $region19: #{tpu_custom_call.1} parent=1 // pred_check_branch
      %40 = sbr.rel (0) target = $region21
    $region20: #{tpu_custom_call.1} parent=1 // pred_region
      %41 = dma.done [#allocation4], 16
    $region21: #{tpu_custom_call.1} parent=1 // pred_fallthru
      _
    %42 = vsyncpa [#allocation3], 1
    %43 = vsyncpa [#allocation4], 1

</llo_original>
